<compile_context>
chip_gen: v5e
topology: v5e:2x2
jax: 0.10.0
libtpu: 0.0.40
codegen_flags: <defaults>
</compile_context>

<pallas_src>
import functools

import jax
import jax.numpy as jnp
from jax.experimental import pallas as pl
from jax.experimental.pallas import tpu as pltpu

_LANE = 128


def _hw_defaults():
    """Generation-aware (target_chunk_bytes, vmem_limit_cap, is_v5)."""
    vmem_phys = None
    try:
        vmem_phys = int(pltpu.get_tpu_info().vmem_capacity_bytes)
    except Exception:
        vmem_phys = None
    kind = ""
    try:
        kind = jax.devices()[0].device_kind.lower()
    except Exception:
        pass
    is_v5 = "v5" in kind
    if vmem_phys is None:
        # v5e/v6e: 128 MiB physical VMEM; v7x (and unknown/newer): assume 64 MiB.
        vmem_phys = (128 << 20) if ("v5" in kind or "v6" in kind) else (64 << 20)
    # Scoped-VMEM cap: leave ~25% physical headroom, never below the 32 MiB
    # default, never above 96 MiB (v5e/v6e have room to spare).
    cap = int(min(96 << 20, max(32 << 20, (vmem_phys * 3) // 4)))
    if vmem_phys >= (96 << 20):
        target = 6 << 20                      # v5e/v6e: big buffers, ~95%+ of roofline
    else:
        target = int(max(1 << 20, min(4 << 20, cap // 12)))   # v7x: ~4 MiB/buffer
    return target, cap, is_v5


def _mixup_gather_kernel(native, idx_ref, lam_ref, x_ref, xg_ref, o_ref):
    # idx_ref: scalar-prefetch SMEM int32[B] (consumed by index_maps only)
    # lam_ref: SMEM float32[B]
    # x_ref  : VMEM (1, chunk, 128) block of sample b
    # xg_ref : VMEM (1, chunk, 128) block of sample idx[b] (gather via index_map)
    del idx_ref
    b = pl.program_id(0)
    lam = lam_ref[b]
    if native:
        # bf16-native math on v6e/v7x (bf16 VALU): one fewer op, half the vregs.
        xv = x_ref[...]
        xg = xg_ref[...]
        o_ref[...] = xg + (xv - xg) * lam.astype(o_ref.dtype)
    else:
        xv = x_ref[...].astype(jnp.float32)
        xg = xg_ref[...].astype(jnp.float32)
        o_ref[...] = (xv * lam + xg * (1.0 - lam)).astype(o_ref.dtype)


def _mixup_pregathered_kernel(native, lam_ref, x_ref, xg_ref, o_ref):
    # lam_ref: VMEM (TB, 1) float32; x_ref/xg_ref/o_ref: VMEM (TB, tile_d)
    lam = lam_ref[...]
    if native:
        xv = x_ref[...]
        xg = xg_ref[...]
        o_ref[...] = xg + (xv - xg) * lam.astype(o_ref.dtype)
    else:
        xv = x_ref[...].astype(jnp.float32)
        xg = xg_ref[...].astype(jnp.float32)
        o_ref[...] = (xv * lam + xg * (1.0 - lam)).astype(o_ref.dtype)


def manifold_mixup(x, lam, idx, *, target_chunk_bytes=None,
                   small_threshold_bytes=256 << 10):
    """x: (B, C, H, W); lam: (B,) float; idx: (B,) int32."""
    B, C, H, W = x.shape
    D = C * H * W
    dtype = x.dtype
    itemsize = jnp.dtype(dtype).itemsize

    auto_target, vmem_cap, is_v5 = _hw_defaults()
    if target_chunk_bytes is None:
        target_chunk_bytes = auto_target

    lam_f32 = lam.astype(jnp.float32)
    idx = idx.astype(jnp.int32)

    # bf16 math only where the VPU has native bf16 (v6e/v7x); v5e upcasts to f32.
    native = bool(dtype == jnp.bfloat16 and not is_v5)
    # Packed-sublane granularity: 8 (f32), 16 (bf16/f16), 32 (int8/fp8).
    g_sub = 8 * max(1, 4 // itemsize)

    aligned = (D % _LANE == 0)
    sample_bytes = D * itemsize
    # Mem-bound kernel: 2 reads + 1 write, ~3 flops/element.
    cost = pl.CostEstimate(flops=3 * B * D, transcendentals=0,
                           bytes_accessed=3 * B * D * itemsize)

    if aligned and sample_bytes >= small_threshold_bytes:
        # ---- Large-D path: lane-dense slabs, in-kernel gather via scalar prefetch.
        rows = D // _LANE
        x3d = x.reshape(B, rows, _LANE)          # free bitcast, no extra HBM pass

        max_rows = max(g_sub,
                       (target_chunk_bytes // (_LANE * itemsize)) // g_sub * g_sub)
        chunk = rows if rows <= max_rows else max_rows   # mult of g_sub or full dim
        n_chunks = pl.cdiv(rows, chunk)
        # Keep both of v7x's TensorCores busy (no-op on v5e/v6e).
        if B * n_chunks < 2 and rows > g_sub:
            chunk = min(rows, pl.cdiv(pl.cdiv(rows, 2), g_sub) * g_sub)
            n_chunks = pl.cdiv(rows, chunk)

        buf_bytes = chunk * _LANE * itemsize
        vmem_limit = int(min(vmem_cap, max(32 << 20, 2 * (3 * 2 * buf_bytes))))

        grid_spec = pltpu.PrefetchScalarGridSpec(
            num_scalar_prefetch=1,               # idx -> SMEM, visible to index_maps
            grid=(B, n_chunks),
            in_specs=[
                # lam lives whole in SMEM; indexed by program_id(0) in the kernel.
                pl.BlockSpec(memory_space=pltpu.SMEM),
                # x[b] chunk (identity row).
                pl.BlockSpec((1, chunk, _LANE), lambda b, d, idx_ref: (b, d, 0)),
                # x[idx[b]] chunk (data-dependent gather via scalar prefetch).
                pl.BlockSpec((1, chunk, _LANE),
                             lambda b, d, idx_ref: (idx_ref[b], d, 0)),
            ],
            out_specs=pl.BlockSpec((1, chunk, _LANE), lambda b, d, idx_ref: (b, d, 0)),
        )

        out3d = pl.pallas_call(
            functools.partial(_mixup_gather_kernel, native),
            out_shape=jax.ShapeDtypeStruct((B, rows, _LANE), dtype),
            grid_spec=grid_spec,
            compiler_params=pltpu.CompilerParams(
                # Every step writes a disjoint output block; the gather is
                # read-only, so both axes are safely parallel (2x on v7x's 2 TCs).
                dimension_semantics=("parallel", "parallel"),
                vmem_limit_bytes=vmem_limit,
            ),
            cost_estimate=cost,
        )(idx, lam_f32, x3d, x3d)
        return out3d.reshape(B, C, H, W)

    # ---- Small-D / unaligned-D path: batch samples per step, pre-gathered x[idx].
    # TODO(synk): for large unaligned D, an in-kernel manual make_async_copy
    # gather (memory_space=pl.ANY x ref) would drop the extra take() HBM pass.
    x2d = x.reshape(B, D)                        # free bitcast
    xg2d = x2d[idx]                              # tiny for small D
    lam2d = lam_f32.reshape(B, 1)

    row_bytes = D * itemsize
    if B * row_bytes <= target_chunk_bytes:
        TB, tile_d = B, D                        # whole problem in one block
    else:
        tb_fit = max(1, target_chunk_bytes // row_bytes)
        if tb_fit >= g_sub:
            TB = min((tb_fit // g_sub) * g_sub, B)
            tile_d = D
        else:
            TB = g_sub if B >= g_sub else B
            tile_d = max(_LANE,
                         (target_chunk_bytes // (TB * itemsize)) // _LANE * _LANE)
            if tile_d >= D:
                tile_d = D
    # Keep both v7x TensorCores busy when the problem is worth splitting.
    if (pl.cdiv(B, TB) * pl.cdiv(D, tile_d)) < 2 and B * row_bytes > (512 << 10):
        if tile_d == D and D % _LANE == 0 and D >= 2 * _LANE:
            tile_d = pl.cdiv(D // _LANE, 2) * _LANE
        elif TB == B and B >= 2 * g_sub:
            TB = pl.cdiv(pl.cdiv(B, 2), g_sub) * g_sub

    buf_bytes = TB * tile_d * itemsize
    vmem_limit = int(min(vmem_cap, max(32 << 20, 2 * (3 * 2 * buf_bytes))))

    grid = (pl.cdiv(B, TB), pl.cdiv(D, tile_d))
    out2d = pl.pallas_call(
        functools.partial(_mixup_pregathered_kernel, native),
        out_shape=jax.ShapeDtypeStruct((B, D), dtype),
        grid=grid,
        in_specs=[
            pl.BlockSpec((TB, 1), lambda i, j: (i, 0)),
            pl.BlockSpec((TB, tile_d), lambda i, j: (i, j)),
            pl.BlockSpec((TB, tile_d), lambda i, j: (i, j)),
        ],
        out_specs=pl.BlockSpec((TB, tile_d), lambda i, j: (i, j)),
        compiler_params=pltpu.CompilerParams(
            dimension_semantics=("parallel", "parallel"),
            vmem_limit_bytes=vmem_limit,
        ),
        cost_estimate=cost,
    )(lam2d, x2d, xg2d)
    return out2d.reshape(B, C, H, W)


def manifold_mixup_ref(x, lam, idx):
    return x * lam[:, None, None, None] + x[idx] * (1.0 - lam)[:, None, None, None]


if __name__ == "__main__":
    key = jax.random.PRNGKey(0)
    kx, klam, kidx = jax.random.split(key, 3)

    # Primary shape implied by the module's forward (B, C, H, W).
    B, C, H, W = 2, 4, 16, 16
    x = jax.random.normal(kx, (B, C, H, W), dtype=jnp.float32)
    lam = jax.random.uniform(klam, (B,), dtype=jnp.float32)
    idx = jax.random.permutation(kidx, B).astype(jnp.int32)

    out = manifold_mixup(x, lam, idx)
    jax.block_until_ready(out)
    ref = manifold_mixup_ref(x, lam, idx)
    assert out.shape == (B, C, H, W)
    assert jnp.allclose(out, ref, atol=1e-6, rtol=1e-6)

    # Also exercise the large-D in-kernel-gather path at the same small shape.
    out_g = manifold_mixup(x, lam, idx, small_threshold_bytes=0)
    jax.block_until_ready(out_g)
    assert jnp.allclose(out_g, ref, atol=1e-6, rtol=1e-6)

    # And the non-128-aligned D path (no wrapper pad/slice passes).
    k2x, k2lam, k2idx = jax.random.split(jax.random.PRNGKey(1), 3)
    B2, C2, H2, W2 = 3, 3, 5, 7
    x2 = jax.random.normal(k2x, (B2, C2, H2, W2), dtype=jnp.float32)
    lam2 = jax.random.uniform(k2lam, (B2,), dtype=jnp.float32)
    idx2 = jax.random.permutation(k2idx, B2).astype(jnp.int32)
    out2 = manifold_mixup(x2, lam2, idx2)
    jax.block_until_ready(out2)
    ref2 = manifold_mixup_ref(x2, lam2, idx2)
    assert jnp.allclose(out2, ref2, atol=1e-6, rtol=1e-6)

    print("KERNEL_OK")
</pallas_src>

<mosaic_0001>
module attributes {stable_mosaic.version = 11 : i64} {
  func.func @_mixup_pregathered_kernel(%arg0: i32, %arg1: i32, %arg2: memref<2x1xf32, #tpu.memory_space<vmem>>, %arg3: memref<2x1024xf32, #tpu.memory_space<vmem>>, %arg4: memref<2x1024xf32, #tpu.memory_space<vmem>>, %arg5: memref<2x1024xf32, #tpu.memory_space<vmem>>) attributes {dimension_semantics = [#tpu.dimension_semantics<parallel>, #tpu.dimension_semantics<parallel>], iteration_bounds = array<i64: 1, 1>, scalar_prefetch = 0 : i64, scratch_operands = 0 : i64, tpu.core_type = #tpu.core_type<tc>, window_params = [{transform_indices = @transform_0, window_bounds = array<i64: 2, 1>}, {transform_indices = @transform_1, window_bounds = array<i64: 2, 1024>}, {transform_indices = @transform_2, window_bounds = array<i64: 2, 1024>}, {transform_indices = @transform_3, window_bounds = array<i64: 2, 1024>}]} {
    %c0 = arith.constant 0 : index
    %c0_0 = arith.constant 0 : index
    %0 = vector.load %arg2[%c0, %c0_0] : memref<2x1xf32, #tpu.memory_space<vmem>>, vector<2x1xf32>
    %c0_1 = arith.constant 0 : index
    %c0_2 = arith.constant 0 : index
    %1 = vector.load %arg3[%c0_1, %c0_2] : memref<2x1024xf32, #tpu.memory_space<vmem>>, vector<2x1024xf32>
    %c0_3 = arith.constant 0 : index
    %c0_4 = arith.constant 0 : index
    %2 = vector.load %arg4[%c0_3, %c0_4] : memref<2x1024xf32, #tpu.memory_space<vmem>>, vector<2x1024xf32>
    %3 = vector.broadcast %0 : vector<2x1xf32> to vector<2x1024xf32>
    %4 = arith.mulf %1, %3 : vector<2x1024xf32>
    %cst = arith.constant 1.000000e+00 : f32
    %5 = vector.broadcast %cst : f32 to vector<2x1xf32>
    %6 = arith.subf %5, %0 : vector<2x1xf32>
    %7 = vector.broadcast %6 : vector<2x1xf32> to vector<2x1024xf32>
    %8 = arith.mulf %2, %7 : vector<2x1024xf32>
    %9 = arith.addf %4, %8 : vector<2x1024xf32>
    %c0_5 = arith.constant 0 : index
    %c0_6 = arith.constant 0 : index
    %10 = vector.load %arg5[%c0_5, %c0_6] : memref<2x1024xf32, #tpu.memory_space<vmem>>, vector<2x1024xf32>
    tpu.vector_store %arg5[%c0_5, %c0_6], %9 {strides = array<i32>} : memref<2x1024xf32, #tpu.memory_space<vmem>>, vector<2x1024xf32>,
    return
  }
  func.func @transform_0(%arg0: i32, %arg1: i32) -> (i32, i32) {
    %c0_i32 = arith.constant 0 : i32
    %c0_i32_0 = arith.constant 0 : i32
    return %arg0, %c0_i32 : i32, i32
  }
  func.func @transform_1(%arg0: i32, %arg1: i32) -> (i32, i32) {
    %c0_i32 = arith.constant 0 : i32
    return %arg0, %arg1 : i32, i32
  }
  func.func @transform_2(%arg0: i32, %arg1: i32) -> (i32, i32) {
    %c0_i32 = arith.constant 0 : i32
    return %arg0, %arg1 : i32, i32
  }
  func.func @transform_3(%arg0: i32, %arg1: i32) -> (i32, i32) {
    %c0_i32 = arith.constant 0 : i32
    return %arg0, %arg1 : i32, i32
  }
}

</mosaic_0001>

<llo_original>
// kernel: tpu_custom_call.1
$region0: #{tpu_custom_call.1}
  #allocation0 [shape = 'u32[]', space=smem, size = 0x4, offset = 0x4, fixed_abs, tag = 'smem constant byte address 0x4 - core index']
  #allocation1 [shape = 'u32[72,128]{1,0:T(1,128)}', space=vmem, size = 0x9000, scoped, tag = 'internal scratch']
  %s0 = inlined_call_operand.vmem [shape: f32[2,1], index: 0, kind: input, shape index: {}]
  %s1 = inlined_call_operand.hbm [shape: f32[2,1024], index: 1, kind: input, shape index: {}]
  %s2 = inlined_call_operand.hbm [shape: f32[2,1024], index: 2, kind: input, shape index: {}]
  %s3 = inlined_call_operand.hbm [shape: f32[2,1024], index: 3, kind: output, shape index: {}]
  %s4 = sld [smem:[#allocation0]]
  $region30: #{tpu_custom_call.1} parent=0
    _
  %s6 = ssub.s32 1, %s4
  %s7 = scalar_select 0, %s6, %s4
  $region1: #{tpu_custom_call.1} parent=0
    #allocation2 [shape = 'u8[8192]{0}', space=vmem, size = 0x2000, scoped, tag = 'input window, operand 1, single buffered']
    #allocation3 [shape = 's32[1]{0}', space=sflag, size = 0x4, scoped, tag = 'scoped memory for tpu_custom_call.1']
    #allocation4 [shape = 's32[1]{0}', space=sflag, size = 0x4, scoped, tag = 'scoped memory for tpu_custom_call.1']
    #allocation5 [shape = 'u8[8192]{0}', space=vmem, size = 0x2000, scoped, tag = 'input window, operand 2, single buffered']
    #allocation6 [shape = 's32[1]{0}', space=sflag, size = 0x4, scoped, tag = 'scoped memory for tpu_custom_call.1']
    #allocation7 [shape = 'u8[8192]{0}', space=vmem, size = 0x2000, scoped, tag = 'output window, operand 0, single buffered']
    %8 = vsyncpa [#allocation3], 0
    %9 = vsyncpa [#allocation6], 0
    %10 = vsyncpa [#allocation4], 0
    // Predicated region
    $region2: #{tpu_custom_call.1} parent=1 // pred_check
      _
    $region3: #{tpu_custom_call.1} parent=1 // pred_check_branch
      %12 = sbr.rel (0) target = $region5
    $region4: #{tpu_custom_call.1} parent=1 // pred_region
      _
    $region5: #{tpu_custom_call.1} parent=1 // pred_fallthru
      _
    // Predicated region
    $region6: #{tpu_custom_call.1} parent=1 // pred_check
      _
    $region7: #{tpu_custom_call.1} parent=1 // pred_check_branch
      %14 = sbr.rel (0) target = $region9
    $region8: #{tpu_custom_call.1} parent=1 // pred_region
      %16 = vsyncadd [#allocation3], 0
      %s18 = sshll.u32 %s1, 4
      %s19 = int_to_ptr.hbm [resolvable:$true] %s18
      %s20 = sshll.u32 [#allocation2], 4
      %s21 = int_to_ptr.vmem [resolvable:$true] %s20
      %23 = dma.hbm_to_vmem [thread:$0]  %s19, 256, %s21, [#allocation3]
    $region9: #{tpu_custom_call.1} parent=1 // pred_fallthru
      _
    // Predicated region
    $region10: #{tpu_custom_call.1} parent=1 // pred_check
      _
    $region11: #{tpu_custom_call.1} parent=1 // pred_check_branch
      %25 = sbr.rel (0) target = $region13
    $region12: #{tpu_custom_call.1} parent=1 // pred_region
      %27 = vsyncadd [#allocation6], 0
      %s29 = sshll.u32 %s2, 4
      %s30 = int_to_ptr.hbm [resolvable:$true] %s29
      %s31 = sshll.u32 [#allocation5], 4
      %s32 = int_to_ptr.vmem [resolvable:$true] %s31
      %34 = dma.hbm_to_vmem [thread:$0]  %s30, 256, %s32, [#allocation6]
    $region13: #{tpu_custom_call.1} parent=1 // pred_fallthru
      _
    // Predicated region
    $region14: #{tpu_custom_call.1} parent=1 // pred_check
      _
    $region15: #{tpu_custom_call.1} parent=1 // pred_check_branch
      %36 = sbr.rel (0) target = $region17
    $region16: #{tpu_custom_call.1} parent=1 // pred_region
      %38 = dma.done [#allocation3], 256
    $region17: #{tpu_custom_call.1} parent=1 // pred_fallthru
      _
    // Predicated region
    $region18: #{tpu_custom_call.1} parent=1 // pred_check
      _
    $region19: #{tpu_custom_call.1} parent=1 // pred_check_branch
      %40 = sbr.rel (0) target = $region21
    $region20: #{tpu_custom_call.1} parent=1 // pred_region
      %42 = dma.done [#allocation6], 256
    $region21: #{tpu_custom_call.1} parent=1 // pred_fallthru
      _
    %v43 = vld [vmem:[%s0] sm:$0x3]
    %v44 = vld [vmem:[#allocation2] sm:$0xff]
    %v45 = vld [vmem:[#allocation2 + $0x8] sm:$0xff]
    %v46 = vld [vmem:[#allocation5] sm:$0xff]
    %v47 = vld [vmem:[#allocation5 + $0x8] sm:$0xff]
    %49 = vset.pattern.permute.xlu0 0
    %50 = vperm.xlu0 %49, %v43
    %v51 = vpop.permute.xlu0 %50
    %v53 = vunpack.c.l.s4 269488144
    %v54 = vunpack.c.0.s8 %v53
    %v55 = vperm.slane %v51, %v54
    %v57 = vmul.f32 %v44, %v55
    %v58 = vmul.f32 %v45, %v55
    %v59 = vsub.f32 1.0, %v43
    %61 = vset.pattern.permute.xlu0 0
    %62 = vperm.xlu0 %61, %v59
    %v63 = vpop.permute.xlu0 %62
    %v65 = vunpack.c.l.s4 269488144
    %v66 = vunpack.c.0.s8 %v65
    %v67 = vperm.slane %v63, %v66
    %v69 = vmul.f32 %v46, %v67
    %v70 = vmul.f32 %v47, %v67
    %v71 = vadd.f32 %v57, %v69
    %v72 = vadd.f32 %v58, %v70
    %73 = vst [vmem:[#allocation7] sm:$0xff] %v71
    %74 = vst [vmem:[#allocation7 + $0x8] sm:$0xff] %v72
    // Predicated region
    $region22: #{tpu_custom_call.1} parent=1 // pred_check
      _
    $region23: #{tpu_custom_call.1} parent=1 // pred_check_branch
      %76 = sbr.rel (0) target = $region25
    $region24: #{tpu_custom_call.1} parent=1 // pred_region
      %78 = vsyncadd [#allocation4], 0
      %s80 = sshll.u32 [#allocation7], 4
      %s81 = int_to_ptr.vmem [resolvable:$true] %s80
      %s82 = sshll.u32 %s3, 4
      %s83 = int_to_ptr.hbm [resolvable:$true] %s82
      %85 = dma.vmem_to_hbm [thread:$0]  %s81, 256, %s83, [#allocation4]
    $region25: #{tpu_custom_call.1} parent=1 // pred_fallthru
      _
    // Predicated region
    $region26: #{tpu_custom_call.1} parent=1 // pred_check
      _
    $region27: #{tpu_custom_call.1} parent=1 // pred_check_branch
      %87 = sbr.rel (0) target = $region29
    $region28: #{tpu_custom_call.1} parent=1 // pred_region
      %89 = dma.done [#allocation4], 256
    $region29: #{tpu_custom_call.1} parent=1 // pred_fallthru
      _
    %90 = vsyncpa [#allocation3], 1
    %91 = vsyncpa [#allocation6], 1
    %92 = vsyncpa [#allocation4], 1

</llo_original>
